<compile_context>
chip_gen: v7x
topology: tpu7x:2x2x1
jax: 0.10.0
libtpu: 0.0.40
codegen_flags: <defaults>
</compile_context>

<pallas_src>
import jax
import jax.numpy as jnp
from jax.experimental import pallas as pl
from jax.experimental.pallas import tpu as pltpu


_LANE_CHUNK = 2048  # per-chunk f32 accumulator (OC=12, 2048) ~= 24 vregs


def bbox_head_kernel(x_ref, w_ref, b_ref, o_ref):
    # x_ref: (1, Cin, tl)  w_ref: (OC, Cin)  b_ref: (OC, 1) f32  o_ref: (1, OC, tl)
    w = w_ref[...]
    b = b_ref[...]
    tl = x_ref.shape[-1]
    # Static (trace-time) chunking of the lane axis: the DMA block stays large
    # (amortizes per-step overhead) while the compute working set per chunk is
    # bounded well under the 64-vreg register file -> no spill traffic.
    for c0 in range(0, tl, _LANE_CHUNK):
        csz = min(_LANE_CHUNK, tl - c0)
        acc = jnp.dot(w, x_ref[0, :, c0:c0 + csz],
                      preferred_element_type=jnp.float32)
        o_ref[0, :, c0:c0 + csz] = (acc + b).astype(o_ref.dtype)


def _pick_tile(HW, N, tile_hw):
    """Lane-tile selection: big, multiple of 128 (or the full extent),
    dividing HW when feasible, and giving >= 2 grid steps when N == 1."""
    tile_hw = max(128, (tile_hw // 128) * 128)
    if HW <= tile_hw:
        if N >= 2 or HW <= 256:
            return HW
        # Single image, map fits in one tile: split spatially so both v7x
        # TensorCores get a 'parallel' grid step.
        half = ((HW + 1) // 2 + 127) // 128 * 128
        return min(half, HW)
    # Largest multiple-of-128 tile <= tile_hw that divides HW (no wasted
    # padded-tail DMA); otherwise fall back to tile_hw with a masked tail.
    for d in range(tile_hw, 127, -128):
        if HW % d == 0:
            return d
    return tile_hw


def bbox_head_forward(x_nchw, weight, bias, *, num_anchors=3, tile_hw=8192):
    """x_nchw: (N, Cin, H, W); weight: (OC, Cin, 1, 1); bias: (OC,)."""
    N, Cin, H, W = x_nchw.shape
    OC = weight.shape[0]
    assert OC == num_anchors * 4
    HW = H * W

    # Free view (no data movement): NCHW seen as (N, Cin, H*W).
    x3d = x_nchw.reshape(N, Cin, HW)

    # 1x1 conv weight as the (OC, Cin) left matmul operand, in x's dtype so a
    # bf16 activation is not silently promoted to f32 inside the dot.  Bias is
    # kept f32 and added to the f32 accumulator.
    w2d = weight.reshape(OC, Cin).astype(x_nchw.dtype)
    b2d = bias.reshape(OC, 1).astype(jnp.float32)

    tl = _pick_tile(HW, N, tile_hw)
    grid = (N, pl.cdiv(HW, tl))

    itemsize = x_nchw.dtype.itemsize
    # Double-buffered x and out blocks plus resident weights, with headroom.
    # Keeps large tiles safe on v5e's 16 MiB default scoped VMEM; capped at
    # 64 MiB (v7x physical VMEM per TensorCore).
    vmem_need = (2 * (Cin + OC) * tl + OC * Cin) * itemsize + OC * 4
    vmem_limit = int(min(64 * 1024 * 1024, max(32 * 1024 * 1024, 2 * vmem_need)))

    cost = pl.CostEstimate(
        flops=2 * N * HW * Cin * OC,
        transcendentals=0,
        bytes_accessed=(N * Cin * HW + N * OC * HW + OC * Cin) * itemsize + OC * 4,
    )

    out_nc_hw = pl.pallas_call(
        bbox_head_kernel,
        out_shape=jax.ShapeDtypeStruct((N, OC, HW), x_nchw.dtype),
        grid_spec=pltpu.PrefetchScalarGridSpec(
            num_scalar_prefetch=0,
            grid=grid,
            in_specs=[
                pl.BlockSpec((1, Cin, tl), lambda n, j: (n, 0, j)),
                pl.BlockSpec((OC, Cin), lambda n, j: (0, 0)),   # VMEM-resident
                pl.BlockSpec((OC, 1), lambda n, j: (0, 0)),     # VMEM-resident
            ],
            out_specs=pl.BlockSpec((1, OC, tl), lambda n, j: (n, 0, j)),
        ),
        compiler_params=pltpu.CompilerParams(
            dimension_semantics=("parallel", "parallel"),
            vmem_limit_bytes=vmem_limit),
        cost_estimate=cost,
    )(x3d, w2d, b2d)

    # (N, OC, H*W) -> (N, H*W, OC) -> (N, H*W*A, 4).  Touches only the small
    # OC = A*4 channel axis and exactly reproduces PyTorch's
    # permute(0, 2, 3, 1).contiguous().view(N, -1, 4).
    return jnp.transpose(out_nc_hw, (0, 2, 1)).reshape(N, HW * num_anchors, 4)


if __name__ == "__main__":
    key = jax.random.PRNGKey(0)
    kx, kw, kb = jax.random.split(key, 3)

    num_anchors = 3
    OC = num_anchors * 4
    Cin = 32

    weight = jax.random.normal(kw, (OC, Cin, 1, 1), dtype=jnp.float32) * 0.05
    bias = jax.random.normal(kb, (OC,), dtype=jnp.float32) * 0.01

    def reference(x):
        n, _, h, w = x.shape
        r = jnp.einsum("nchw,oc->nhwo", x, weight.reshape(OC, Cin)) + bias
        return r.reshape(n, h * w * num_anchors, 4)

    cases = [
        (2, 8, 8),     # single tile, single in-kernel chunk
        (2, 48, 48),   # single tile, multi-chunk compute (2048 + 256 lanes)
        (1, 20, 20),   # N==1 spatial split (2 parallel steps) + masked tail
    ]
    for (N, H, W) in cases:
        x = jax.random.normal(kx, (N, Cin, H, W), dtype=jnp.float32)
        out = bbox_head_forward(x, weight, bias, num_anchors=num_anchors)
        out = jax.block_until_ready(out)
        ref = reference(x)
        assert out.shape == (N, H * W * num_anchors, 4), out.shape
        assert jnp.allclose(out, ref, atol=1e-4, rtol=1e-4), (N, H, W)

    print("KERNEL_OK")
</pallas_src>

<mosaic_0001>
module attributes {stable_mosaic.version = 11 : i64} {
  func.func @bbox_head_kernel(%arg0: i32, %arg1: i32, %arg2: memref<1x32x64xf32, #tpu.memory_space<vmem>>, %arg3: memref<12x32xf32, #tpu.memory_space<vmem>>, %arg4: memref<12x1xf32, #tpu.memory_space<vmem>>, %arg5: memref<1x12x64xf32, #tpu.memory_space<vmem>>) attributes {dimension_semantics = [#tpu.dimension_semantics<parallel>, #tpu.dimension_semantics<parallel>], iteration_bounds = array<i64: 2, 1>, scalar_prefetch = 0 : i64, scratch_operands = 0 : i64, tpu.core_type = #tpu.core_type<tc>, window_params = [{transform_indices = @transform_0, window_bounds = array<i64: 1, 32, 64>}, {pipeline_mode = #tpu.pipeline_mode<synchronous>, transform_indices = @transform_1, window_bounds = array<i64: 12, 32>}, {pipeline_mode = #tpu.pipeline_mode<synchronous>, transform_indices = @transform_2, window_bounds = array<i64: 12, 1>}, {transform_indices = @transform_3, window_bounds = array<i64: 1, 12, 64>}]} {
    %c0 = arith.constant 0 : index
    %c0_0 = arith.constant 0 : index
    %0 = vector.load %arg3[%c0, %c0_0] : memref<12x32xf32, #tpu.memory_space<vmem>>, vector<12x32xf32>
    %c0_1 = arith.constant 0 : index
    %c0_2 = arith.constant 0 : index
    %1 = vector.load %arg4[%c0_1, %c0_2] : memref<12x1xf32, #tpu.memory_space<vmem>>, vector<12x1xf32>
    %c0_3 = arith.constant 0 : index
    %c0_4 = arith.constant 0 : index
    %c0_5 = arith.constant 0 : index
    %2 = vector.load %arg2[%c0_3, %c0_4, %c0_5] : memref<1x32x64xf32, #tpu.memory_space<vmem>>, vector<1x32x64xf32>
    %3 = vector.shape_cast %2 : vector<1x32x64xf32> to vector<32x64xf32>
    %cst = arith.constant dense<0.000000e+00> : vector<12x64xf32>
    %4 = tpu.matmul %0, %3, %cst {dimension_numbers = #tpu.dot_dimension_numbers<[1], [0], [0], [1], [0, 0, 1, 1], [], []>} : vector<12x32xf32>, vector<32x64xf32>, vector<12x64xf32> -> vector<12x64xf32>
    %5 = vector.broadcast %1 : vector<12x1xf32> to vector<12x64xf32>
    %6 = arith.addf %4, %5 : vector<12x64xf32>
    %c0_6 = arith.constant 0 : index
    %c0_7 = arith.constant 0 : index
    %c0_8 = arith.constant 0 : index
    %7 = vector.load %arg5[%c0_6, %c0_7, %c0_8] : memref<1x12x64xf32, #tpu.memory_space<vmem>>, vector<1x12x64xf32>
    %8 = vector.shape_cast %7 : vector<1x12x64xf32> to vector<12x64xf32>
    %9 = vector.shape_cast %6 : vector<12x64xf32> to vector<1x12x64xf32>
    tpu.vector_store %arg5[%c0_6, %c0_7, %c0_8], %9 {strides = array<i32>} : memref<1x12x64xf32, #tpu.memory_space<vmem>>, vector<1x12x64xf32>,
    return
  }
  func.func @transform_0(%arg0: i32, %arg1: i32) -> (i32, i32, i32) {
    %c0_i32 = arith.constant 0 : i32
    %c0_i32_0 = arith.constant 0 : i32
    return %arg0, %c0_i32, %arg1 : i32, i32, i32
  }
  func.func @transform_1(%arg0: i32, %arg1: i32) -> (i32, i32) {
    %c0_i32 = arith.constant 0 : i32
    %c0_i32_0 = arith.constant 0 : i32
    %c0_i32_1 = arith.constant 0 : i32
    return %c0_i32, %c0_i32_0 : i32, i32
  }
  func.func @transform_2(%arg0: i32, %arg1: i32) -> (i32, i32) {
    %c0_i32 = arith.constant 0 : i32
    %c0_i32_0 = arith.constant 0 : i32
    %c0_i32_1 = arith.constant 0 : i32
    return %c0_i32, %c0_i32_0 : i32, i32
  }
  func.func @transform_3(%arg0: i32, %arg1: i32) -> (i32, i32, i32) {
    %c0_i32 = arith.constant 0 : i32
    %c0_i32_0 = arith.constant 0 : i32
    return %arg0, %c0_i32, %arg1 : i32, i32, i32
  }
}

</mosaic_0001>

<llo_original>
// kernel: tpu_custom_call.1
$region0: #{tpu_custom_call.1}
  #allocation0 [shape = 'u32[]', space=smem, size = 0x4, offset = 0x4, fixed_abs, tag = 'smem constant byte address 0x4 - core index']
  #allocation1 [shape = 'u32[144,128]{1,0:T(1,128)}', space=vmem, size = 0x12000, scoped, tag = 'internal scratch']
  %s0 = inlined_call_operand.hbm [shape: f32[2,32,64], index: 0, kind: input, shape index: {}]
  %s1 = inlined_call_operand.vmem [shape: f32[12,32], index: 1, kind: input, shape index: {}]
  %s2 = inlined_call_operand.vmem [shape: f32[12,1], index: 2, kind: input, shape index: {}]
  %s3 = inlined_call_operand.vmem [shape: f32[2,12,64], index: 3, kind: output, shape index: {}]
  %s4 = sld [smem:[#allocation0]]
  $region49: #{tpu_custom_call.1} parent=0
    _
  %s6 = ssub.s32 1, %s4
  %s7 = scalar_select 0, %s6, %s4
  $region1: #{tpu_custom_call.1} parent=0
    #allocation2 [shape = 'u8[32768]{0}', space=vmem, size = 0x8000, scoped, tag = 'input window, operand 0']
    #allocation3 [shape = 's32[2]{0}', space=sflag, size = 0x8, scoped, tag = 'scoped memory for tpu_custom_call.1']
    %8 = vsyncpa [#allocation3], 0
    %s9 = scalar_lea.sflag [#allocation3], 1
    %10 = vsyncpa %s9, 0
    loop: start=0, step=1, limit=4
    $region2: #{tpu_custom_call.1} parent=1 // loop_pre_header
      _
    $region3: #{tpu_custom_call.1} parent=1 // loop_header
      %s12 = sphi 0, %s16
      %p13 = scmp.ge.s32.totalorder %s12, 4
      %s19 = sphi 0, %s31
      %s20 = sphi 0, %s27
      %s21 = sphi 0, %s19
      %s22 = sphi 0, %s20
      %s23 = sphi 0, %s21
      %s24 = sphi 0, %s22
      %s36 = sphi 0, %s38
      %s39 = sphi 0, %s36
      %s40 = sphi 0, %s39
      %s56 = sphi 0, %s40
      %s60 = sphi 0, %s60
      %s62 = sphi 0, %s60
      %s63 = sphi 0, %s62
      %s77 = sphi 0, %s63
      %s81 = sphi 0, %s81
      %s83 = sphi 0, %s81
      %s84 = sphi 0, %s83
      %s98 = sphi 0, %s84
      %s106 = sphi 0, %s108
      %s109 = sphi 0, %s106
      %s110 = sphi 0, %s109
      %s126 = sphi 0, %s110
    $region4: #{tpu_custom_call.1} parent=1 // loop_header_branch
      %15 = sbr.rel (%p13) target = $region8
    $region5: #{tpu_custom_call.1} parent=1 // loop_body
      %s17 = ssub.s32 %s12, 1
      %s18 = ssub.s32 %s12, 2
      %s25 = sadd.s32 1, %s20
      %p26 = scmp.ge.s32.totalorder %s25, 1
      %s27 = scalar_select %p26, 0, %s25
      %s28 = sadd.s32 1, %s19
      %s29 = scalar_select %p26, %s28, %s19
      %p30 = scmp.ge.s32.totalorder %s29, 2
      %s31 = scalar_select %p30, 0, %s29
      %s32 = ssub.s32 %s19, %s31
      %s33 = ssub.s32 %s20, %s27
      %s34 = sor.u32 %s32, %s33
      %p35 = scmp.eq.s32.totalorder %s34, 0
      %s37 = sadd.s32 %s36, 1
      %s38 = scalar_select %p35, %s36, %s37
      %p41 = pneg %p35
      %p42 = scmp.eq.s32.totalorder %s12, 1
      %p43 = por %p41, %p42
      %p44 = scmp.ne.s32.totalorder %s36, %s39
      %p45 = scmp.eq.s32.totalorder %s12, 0
      %p46 = por %p44, %p45
      %p47 = scmp.ne.s32.totalorder %s36, %s39
      %p48 = scmp.eq.s32.totalorder %s17, 1
      %p49 = por %p47, %p48
      %p50 = scmp.ne.s32.totalorder %s39, %s40
      %p51 = scmp.eq.s32.totalorder %s17, 0
      %p52 = por %p50, %p51
      %p53 = scmp.ne.s32.totalorder %s39, %s40
      %p54 = scmp.eq.s32.totalorder %s18, 1
      %p55 = por %p53, %p54
      %p57 = scmp.ne.s32.totalorder %s40, %s56
      %p58 = scmp.eq.s32.totalorder %s18, 0
      %p59 = por %p57, %p58
      %s61 = sadd.s32 %s60, 1
      %p64 = scmp.eq.s32.totalorder %s12, 1
      %p65 = scmp.ne.s32.totalorder %s60, %s62
      %p66 = scmp.eq.s32.totalorder %s12, 0
      %p67 = por %p65, %p66
      %p68 = scmp.ne.s32.totalorder %s60, %s62
      %p69 = scmp.eq.s32.totalorder %s17, 1
      %p70 = por %p68, %p69
      %p71 = scmp.ne.s32.totalorder %s62, %s63
      %p72 = scmp.eq.s32.totalorder %s17, 0
      %p73 = por %p71, %p72
      %p74 = scmp.ne.s32.totalorder %s62, %s63
      %p75 = scmp.eq.s32.totalorder %s18, 1
      %p76 = por %p74, %p75
      %p78 = scmp.ne.s32.totalorder %s63, %s77
      %p79 = scmp.eq.s32.totalorder %s18, 0
      %p80 = por %p78, %p79
      %s82 = sadd.s32 %s81, 1
      %p85 = scmp.eq.s32.totalorder %s12, 1
      %p86 = scmp.ne.s32.totalorder %s81, %s83
      %p87 = scmp.eq.s32.totalorder %s12, 0
      %p88 = por %p86, %p87
      %p89 = scmp.ne.s32.totalorder %s81, %s83
      %p90 = scmp.eq.s32.totalorder %s17, 1
      %p91 = por %p89, %p90
      %p92 = scmp.ne.s32.totalorder %s83, %s84
      %p93 = scmp.eq.s32.totalorder %s17, 0
      %p94 = por %p92, %p93
      %p95 = scmp.ne.s32.totalorder %s83, %s84
      %p96 = scmp.eq.s32.totalorder %s18, 1
      %p97 = por %p95, %p96
      %p99 = scmp.ne.s32.totalorder %s84, %s98
      %p100 = scmp.eq.s32.totalorder %s18, 0
      %p101 = por %p99, %p100
      %s102 = ssub.s32 %s19, %s31
      %s103 = ssub.s32 %s20, %s27
      %s104 = sor.u32 %s102, %s103
      %p105 = scmp.eq.s32.totalorder %s104, 0
      %s107 = sadd.s32 %s106, 1
      %s108 = scalar_select %p105, %s106, %s107
      %p111 = pneg %p105
      %p112 = scmp.eq.s32.totalorder %s12, 1
      %p113 = por %p111, %p112
      %p114 = scmp.ne.s32.totalorder %s106, %s109
      %p115 = scmp.eq.s32.totalorder %s12, 0
      %p116 = por %p114, %p115
      %p117 = scmp.ne.s32.totalorder %s106, %s109
      %p118 = scmp.eq.s32.totalorder %s17, 1
      %p119 = por %p117, %p118
      %p120 = scmp.ne.s32.totalorder %s109, %s110
      %p121 = scmp.eq.s32.totalorder %s17, 0
      %p122 = por %p120, %p121
      %p123 = scmp.ne.s32.totalorder %s109, %s110
      %p124 = scmp.eq.s32.totalorder %s18, 1
      %p125 = por %p123, %p124
      %p127 = scmp.ne.s32.totalorder %s110, %s126
      %p128 = scmp.eq.s32.totalorder %s18, 0
      %p129 = por %p127, %p128
      %p130 = scmp.le.s32.totalorder 1, %s12
      %p131 = scmp.lt.s32.totalorder %s12, 3
      %p132 = pnand %p130, %p131
      %p133 = pneg %p132
      // Predicated region
      $region9: #{tpu_custom_call.1} parent=5 // pred_check
        _
      $region10: #{tpu_custom_call.1} parent=5 // pred_check_branch
        %135 = sbr.rel (%p132) target = $region12
      $region11: #{tpu_custom_call.1} parent=5 // pred_region
        %s136 = ssub.s32 %s12, 1
        // Predicated region
        $region13: #{tpu_custom_call.1} parent=11 // pred_check
          %p137 = pneg %p73
        $region14: #{tpu_custom_call.1} parent=11 // pred_check_branch
          %139 = sbr.rel (%p137) target = $region16
        $region15: #{tpu_custom_call.1} parent=11 // pred_region
          _
        $region16: #{tpu_custom_call.1} parent=11 // pred_fallthru
          _
        // Predicated region
        $region17: #{tpu_custom_call.1} parent=11 // pred_check
          %p140 = pneg %p94
        $region18: #{tpu_custom_call.1} parent=11 // pred_check_branch
          %142 = sbr.rel (%p140) target = $region20
        $region19: #{tpu_custom_call.1} parent=11 // pred_region
          _
        $region20: #{tpu_custom_call.1} parent=11 // pred_fallthru
          _
      $region12: #{tpu_custom_call.1} parent=5 // pred_fallthru
        _
      %p143 = scmp.lt.s32.totalorder %s12, 2
      // Predicated region
      $region21: #{tpu_custom_call.1} parent=5 // pred_check
        %p144 = pneg %p143
      $region22: #{tpu_custom_call.1} parent=5 // pred_check_branch
        %146 = sbr.rel (%p144) target = $region24
      $region23: #{tpu_custom_call.1} parent=5 // pred_region
        // Predicated region
        $region25: #{tpu_custom_call.1} parent=23 // pred_check
          %p147 = pneg %p46
        $region26: #{tpu_custom_call.1} parent=23 // pred_check_branch
          %149 = sbr.rel (%p147) target = $region28
        $region27: #{tpu_custom_call.1} parent=23 // pred_region
          %s150 = sand.u32 %s36, 1
          %s151 = scalar_lea.sflag [#allocation3], %s150
          %s152 = sand.u32 %s36, 1
          %s153 = smul.addr %s152, 32
          %s154 = scalar_lea.vmem [#allocation2], %s153
          %s156 = ssub.s32 512, 512
          %157 = vsyncadd %s151, %s156
          %s158 = smul.addr %s19, 4
          %s159 = sadd.s32 %s20, %s158
          %s160 = smul.addr %s159, 128
          %s161 = scalar_lea.hbm %s0, %s160
          %s162 = sshll.u32 %s154, 4
          %s163 = int_to_ptr.vmem [resolvable:$true] %s162
          %168 = dma.hbm_to_vmem [thread:$0]  %s161, 512, %s163, %s151, 128, 128, 8
        $region28: #{tpu_custom_call.1} parent=23 // pred_fallthru
          _
      $region24: #{tpu_custom_call.1} parent=5 // pred_fallthru
        _
      %p169 = scmp.le.s32.totalorder 1, %s12
      %p170 = scmp.lt.s32.totalorder %s12, 3
      %p171 = pnand %p169, %p170
      %p172 = pneg %p171
      // Predicated region
      $region29: #{tpu_custom_call.1} parent=5 // pred_check
        _
      $region30: #{tpu_custom_call.1} parent=5 // pred_check_branch
        %174 = sbr.rel (%p171) target = $region32
      $region31: #{tpu_custom_call.1} parent=5 // pred_region
        %s175 = ssub.s32 %s12, 1
        %s176 = sand.u32 %s39, 1
        %s177 = scalar_lea.sflag [#allocation3], %s176
        %s178 = sand.u32 %s39, 1
        %s179 = smul.addr %s178, 32
        %s180 = scalar_lea.vmem [#allocation2], %s179
        // Predicated region
        $region33: #{tpu_custom_call.1} parent=31 // pred_check
          %p181 = pneg %p52
        $region34: #{tpu_custom_call.1} parent=31 // pred_check_branch
          %183 = sbr.rel (%p181) target = $region36
        $region35: #{tpu_custom_call.1} parent=31 // pred_region
          %184 = dma.done %s177, 512
        $region36: #{tpu_custom_call.1} parent=31 // pred_fallthru
          _
        %s185 = sand.u32 %s39, 1
        %s186 = scalar_lea.sflag [#allocation3], %s185
        %s187 = sand.u32 %s39, 1
        %s188 = smul.addr %s187, 32
        %s189 = scalar_lea.vmem [#allocation2], %s188
        %p190 = pneg %p52
        %p191 = pneg %p49
        %p192 = pneg %p73
        %p193 = pneg %p70
        %p194 = pneg %p94
        %p195 = pneg %p91
        %p196 = pneg %p122
        %p197 = pneg %p119
        %p198 = scmp.lt.s32.totalorder %s21, 1
        %s199 = scalar_select %p198, %s21, 1
        %p200 = scmp.lt.s32.totalorder %s22, 0
        %s201 = scalar_select %p200, %s22, 0
        %s202 = smul.addr %s199, 2
        %s203 = sadd.s32 %s201, %s202
        %s204 = smul.addr %s203, 8
        %s205 = scalar_lea.vmem %s3, %s204
        %p206 = scmp.lt.s32.totalorder %s21, 1
        %s207 = scalar_select %p206, %s21, 1
        %p208 = scmp.lt.s32.totalorder %s22, 0
        %s209 = scalar_select %p208, %s22, 0
        %s210 = smul.addr %s207, 2
        %s211 = sadd.s32 %s209, %s210
        %s212 = smul.addr %s211, 8
        %s213 = scalar_lea.vmem %s3, %s212
        %v214 = vld [vmem:[%s1] sm:$0xff]
        %v215 = vld [vmem:[%s1 + $0x8] sm:$0xf]
        %v216 = vld [vmem:[%s2] sm:$0xff]
        %v217 = vld [vmem:[%s2 + $0x8] sm:$0xf]
        %v218 = vld [vmem:[%s180] sm:$0xff]
        %v219 = vld [vmem:[%s180 + $0x8] sm:$0xff]
        %v220 = vld [vmem:[%s180 + $0x10] sm:$0xff]
        %v221 = vld [vmem:[%s180 + $0x18] sm:$0xff]
        %223 = vset.pattern.permute.xlu0 0
        %224 = vperm.xlu0 %223, %v216
        %v225 = vpop.permute.xlu0 %224
        %228 = vset.pattern.permute.xlu0 0
        %229 = vperm.xlu0 %228, %v217
        %v230 = vpop.permute.xlu0 %229
        %vm232 = vcmask 261120
        %v234 = vsel %vm232, %v214, 0
        %v237 = vsel %vm232, %v215, 0
        %239 = vmatprep.subr.mxu0 0.0
        %240 = vmatpush1.msra.mxu0 %v218
        %241 = vmatprep.subr.mxu0 0.0
        %242 = vmatpush1.msra.mxu0 %v219
        %243 = vmatprep.subr.mxu0 0.0
        %244 = vmatpush1.msra.mxu0 %v220
        %245 = vmatprep.subr.mxu0 0.0
        %246 = vmatpush1.msra.mxu0 %v221
        %247 = vmatprep.subr.mxu0 0.0
        %248 = vmatpush1.msra.mxu0 0.0
        %249 = vmatprep.subr.mxu0 0.0
        %250 = vmatpush1.msra.mxu0 0.0
        %251 = vmatprep.subr.mxu0 0.0
        %252 = vmatpush1.msra.mxu0 0.0
        %253 = vmatprep.subr.mxu0 0.0
        %254 = vmatpush1.msra.mxu0 0.0
        %255 = vmatprep.subr.mxu0 0.0
        %256 = vmatpush1.msra.mxu0 0.0
        %257 = vmatprep.subr.mxu0 0.0
        %258 = vmatpush1.msra.mxu0 0.0
        %259 = vmatprep.subr.mxu0 0.0
        %260 = vmatpush1.msra.mxu0 0.0
        %261 = vmatprep.subr.mxu0 0.0
        %262 = vmatpush1.msra.mxu0 0.0
        %263 = vmatprep.subr.mxu0 0.0
        %264 = vmatpush1.msra.mxu0 0.0
        %265 = vmatprep.subr.mxu0 0.0
        %266 = vmatpush1.msra.mxu0 0.0
        %267 = vmatprep.subr.mxu0 0.0
        %268 = vmatpush1.msra.mxu0 0.0
        %269 = vmatprep.subr.mxu0 0.0
        %270 = vmatpush1.msra.mxu0 0.0
        %271 = vmatprep.subr.mxu0 0.0
        %272 = vmatpush1.msra.mxu0 0.0
        %273 = vmatprep.subr.mxu0 0.0
        %274 = vmatpush1.msra.mxu0 0.0
        %275 = vmatprep.subr.mxu0 0.0
        %276 = vmatpush1.msra.mxu0 0.0
        %277 = vmatprep.subr.mxu0 0.0
        %278 = vmatpush1.msra.mxu0 0.0
        %279 = vmatprep.subr.mxu0 0.0
        %280 = vmatpush1.msra.mxu0 0.0
        %281 = vmatprep.subr.mxu0 0.0
        %282 = vmatpush1.msra.mxu0 0.0
        %283 = vmatprep.subr.mxu0 0.0
        %284 = vmatpush1.msra.mxu0 0.0
        %285 = vmatprep.subr.mxu0 0.0
        %286 = vmatpush1.msra.mxu0 0.0
        %287 = vmatprep.subr.mxu0 0.0
        %288 = vmatpush1.msra.mxu0 0.0
        %289 = vmatprep.subr.mxu0 0.0
        %290 = vmatpush1.msra.mxu0 0.0
        %291 = vmatprep.subr.mxu0 0.0
        %292 = vmatpush1.msra.mxu0 0.0
        %293 = vmatprep.subr.mxu0 0.0
        %294 = vmatpush1.msra.mxu0 0.0
        %295 = vmatprep.subr.mxu0 0.0
        %296 = vmatpush1.msra.mxu0 0.0
        %297 = vmatprep.subr.mxu0 0.0
        %298 = vmatpush1.msra.mxu0 0.0
        %299 = vmatprep.subr.mxu0 0.0
        %300 = vmatpush1.msra.mxu0 0.0
        %301 = vmatprep.subr.mxu0 0.0
        %302 = vmatpush1.msra.mxu0 0.0
        %303 = vmatprep.mubr.f32.mxu0 0.0
        %304 = vmatmul.mubr.f32.gmra.mrb[0].mxu0 %v234
        %v305 = vpop.f32.mrb[0].mxu0
        %v306 = vadd.f32 %v225, %v305
        %v307 = vpop.f32.mrb[0].mxu0
        %308 = vmatprep.mubr.f32.mxu0 0.0
        %309 = vmatmul.mubr.f32.gmra.mrb[0].mxu0 %v237
        %v310 = vpop.f32.mrb[0].mxu0
        %v311 = vadd.f32 %v230, %v310
        %v312 = vpop.f32.mrb[0].mxu0
        %313 = vdwg.mxu0
        %vm314 = vcmask 523264
        %315 = vst.msk [vmem:[%s213] sm:$0xff] %vm314, %v306
        %vm316 = vcmask 519168
        %317 = vst.msk [vmem:[%s213 + $0x8] sm:$0xf] %vm316, %v311
        %p318 = scmp.lt.s32.totalorder %s21, 1
        %s319 = scalar_select %p318, %s21, 1
        %p320 = scmp.lt.s32.totalorder %s22, 0
        %s321 = scalar_select %p320, %s22, 0
        %s322 = smul.addr %s319, 2
        %s323 = sadd.s32 %s321, %s322
        %s324 = smul.addr %s323, 8
        %s325 = scalar_lea.vmem %s3, %s324
        // Predicated region
        $region37: #{tpu_custom_call.1} parent=31 // pred_check
          %p326 = pneg %p119
        $region38: #{tpu_custom_call.1} parent=31 // pred_check_branch
          %328 = sbr.rel (%p326) target = $region40
        $region39: #{tpu_custom_call.1} parent=31 // pred_region
          _
        $region40: #{tpu_custom_call.1} parent=31 // pred_fallthru
          _
      $region32: #{tpu_custom_call.1} parent=5 // pred_fallthru
        _
      %p329 = scmp.le.s32.totalorder 2, %s12
      // Predicated region
      $region41: #{tpu_custom_call.1} parent=5 // pred_check
        %p330 = pneg %p329
      $region42: #{tpu_custom_call.1} parent=5 // pred_check_branch
        %332 = sbr.rel (%p330) target = $region44
      $region43: #{tpu_custom_call.1} parent=5 // pred_region
        %s333 = ssub.s32 %s12, 2
        // Predicated region
        $region45: #{tpu_custom_call.1} parent=43 // pred_check
          %p334 = pneg %p125
        $region46: #{tpu_custom_call.1} parent=43 // pred_check_branch
          %336 = sbr.rel (%p334) target = $region48
        $region47: #{tpu_custom_call.1} parent=43 // pred_region
          %p337 = scmp.lt.s32.totalorder %s23, 1
          %s338 = scalar_select %p337, %s23, 1
          %p339 = scmp.lt.s32.totalorder %s24, 0
          %s340 = scalar_select %p339, %s24, 0
          %s341 = smul.addr %s338, 2
          %s342 = sadd.s32 %s340, %s341
          %s343 = smul.addr %s342, 8
          %s344 = scalar_lea.vmem %s3, %s343
        $region48: #{tpu_custom_call.1} parent=43 // pred_fallthru
          _
      $region44: #{tpu_custom_call.1} parent=5 // pred_fallthru
        _
    $region6: #{tpu_custom_call.1} parent=1 // loop_footer
      %s16 = sadd.s32 1, %s12
    $region7: #{tpu_custom_call.1} parent=1 // loop_footer_branch
      %11 = sbr.rel target = $region3
    $region8: #{tpu_custom_call.1} parent=1 // loop_exit
      _
    %345 = vsyncpa [#allocation3], 1
    %s346 = scalar_lea.sflag [#allocation3], 1
    %347 = vsyncpa %s346, 1

</llo_original>
